<compile_context>
chip_gen: v5e
topology: v5e:2x2
jax: 0.10.0
libtpu: 0.0.40
codegen_flags: <defaults>
</compile_context>

<pallas_src>
import functools

import jax
import jax.numpy as jnp
from jax.experimental import pallas as pl
from jax.experimental.pallas import tpu as pltpu


def _policy_mlp_kernel(obs_ref, w1_ref, b1_ref, w2_ref, b2_ref, out_ref):
    """One batch tile: out = softmax(relu(obs @ W1 + b1) @ W2 + b2, axis=-1)."""
    # Cast f32 obs -> bf16 on the VPU (free under the DMA); f32 accumulation.
    x = obs_ref[...].astype(jnp.bfloat16)                   # (TILE_B, obs_dim)

    # ---- layer 1: MXU matmul (bf16 in, f32 accumulate), bias + relu on VPU ----
    h = jnp.dot(x, w1_ref[...], preferred_element_type=jnp.float32)
    h = jnp.maximum(h + b1_ref[...], 0.0)                   # (TILE_B, hidden) f32

    # ---- layer 2: logits = h @ W2 + b2 ----
    logits = jnp.dot(h.astype(jnp.bfloat16), w2_ref[...],
                     preferred_element_type=jnp.float32)
    logits = logits + b2_ref[...]                           # (TILE_B, action_dim) f32

    # ---- exact softmax over the (narrow) action axis ----
    m = jnp.max(logits, axis=-1, keepdims=True)
    e = jnp.exp(logits - m)
    denom = jnp.sum(e, axis=-1, keepdims=True)
    # Exact divide: rows sum to 1 within f32 rounding (approx reciprocal did not).
    out_ref[...] = (e / denom).astype(out_ref.dtype)


def _round_up(x, m):
    return ((x + m - 1) // m) * m


def _choose_tiling(B, tile_b):
    """Adaptive batch tiling: multiple of 8 sublanes, minimal padding,
    >=2 grid steps for large batches (v7x dual TensorCore)."""
    tb = max(8, min(tile_b, _round_up(B, 8)))
    n_tiles = pl.cdiv(B, tb)
    if n_tiles == 1 and B >= 1024:
        n_tiles = 2
    tb = _round_up(pl.cdiv(B, n_tiles), 8)
    b_pad = n_tiles * tb
    return tb, n_tiles, b_pad


@functools.partial(jax.jit, static_argnames=("tile_b",))
def policy_mlp_forward(obs, w1, b1, w2, b2, *, tile_b=1024):
    """obs: (B, obs_dim) f32. Returns softmax probabilities (B, action_dim) f32.

    Weights are stored pre-transposed: w1 (obs_dim, hidden), w2 (hidden, action_dim).
    """
    B, obs_dim = obs.shape
    hidden = w1.shape[1]
    action_dim = w2.shape[1]

    tb, n_tiles, b_pad = _choose_tiling(B, tile_b)

    # Only pad the batch if the tiling actually needs it (padding < one tile).
    obs_p = obs if b_pad == B else jnp.pad(obs, ((0, b_pad - B), (0, 0)))
    # bf16 weights halve resident-weight DMA; biases stay f32 (tiny, exact add).
    w1_b = w1.astype(jnp.bfloat16)
    w2_b = w2.astype(jnp.bfloat16)
    b1_f = b1.astype(jnp.float32)
    b2_f = b2.astype(jnp.float32)

    cost = pl.CostEstimate(
        flops=2 * b_pad * (obs_dim * hidden + hidden * action_dim),
        transcendentals=b_pad * action_dim,
        bytes_accessed=(obs_p.size * 4 + w1_b.size * 2 + b1_f.size * 4
                        + w2_b.size * 2 + b2_f.size * 4
                        + b_pad * action_dim * 4),
    )

    # VMEM per step: double-buffered obs tile (tb*obs_dim*4) + narrow out tile
    # + resident weights -- well under the default scoped VMEM limit on
    # v5e/v6e/v7x even at tile_b=4096, so no vmem_limit_bytes override needed.
    # If profiling ever shows exposed obs DMA at very large tiles, add
    # pipeline_mode=pl.Buffered(3) on the obs BlockSpec.
    out = pl.pallas_call(
        _policy_mlp_kernel,
        out_shape=jax.ShapeDtypeStruct((b_pad, action_dim), jnp.float32),
        grid=(n_tiles,),
        in_specs=[
            pl.BlockSpec((tb, obs_dim),        lambda i: (i, 0)),  # obs: tiled on batch
            pl.BlockSpec((obs_dim, hidden),    lambda i: (0, 0)),  # W1: VMEM-resident
            pl.BlockSpec((1, hidden),          lambda i: (0, 0)),  # b1: VMEM-resident
            pl.BlockSpec((hidden, action_dim), lambda i: (0, 0)),  # W2: VMEM-resident
            pl.BlockSpec((1, action_dim),      lambda i: (0, 0)),  # b2: VMEM-resident
        ],
        out_specs=pl.BlockSpec((tb, action_dim), lambda i: (i, 0)),
        compiler_params=pltpu.CompilerParams(
            # Independent batch tiles -> shard across v7x's two TensorCores.
            dimension_semantics=("parallel",),
        ),
        cost_estimate=cost,
    )(obs_p, w1_b, b1_f, w2_b, b2_f)

    return out if b_pad == B else out[:B]


def init_policy_mlp_params(key, obs_dim, action_dim, hidden=128):
    """Deterministic init mirroring torch.nn.Linear default (U(-1/sqrt(fan_in), +))."""
    k1, k2, k3, k4 = jax.random.split(key, 4)
    bound1 = 1.0 / jnp.sqrt(obs_dim)
    bound2 = 1.0 / jnp.sqrt(hidden)
    # Stored pre-transposed: (in, out) so the kernel does x @ W.
    w1 = jax.random.uniform(k1, (obs_dim, hidden), jnp.float32, -bound1, bound1)
    b1 = jax.random.uniform(k2, (1, hidden), jnp.float32, -bound1, bound1)
    w2 = jax.random.uniform(k3, (hidden, action_dim), jnp.float32, -bound2, bound2)
    b2 = jax.random.uniform(k4, (1, action_dim), jnp.float32, -bound2, bound2)
    return w1, b1, w2, b2


if __name__ == "__main__":
    key = jax.random.PRNGKey(0)
    k_obs, k_params = jax.random.split(key)

    batch, obs_dim, action_dim, hidden = 8, 16, 4, 32
    obs = jax.random.normal(k_obs, (batch, obs_dim), dtype=jnp.float32)
    w1, b1, w2, b2 = init_policy_mlp_params(k_params, obs_dim, action_dim, hidden)

    probs = policy_mlp_forward(obs, w1, b1, w2, b2)
    probs = jax.block_until_ready(probs)

    # Pure-JAX reference using the same bf16 matmul operands / f32 accumulation.
    w1b = w1.astype(jnp.bfloat16)
    w2b = w2.astype(jnp.bfloat16)
    h_ref = jnp.maximum(
        jnp.dot(obs.astype(jnp.bfloat16), w1b,
                preferred_element_type=jnp.float32) + b1, 0.0)
    logits_ref = jnp.dot(h_ref.astype(jnp.bfloat16), w2b,
                         preferred_element_type=jnp.float32) + b2
    ref = jax.nn.softmax(logits_ref, axis=1)

    assert probs.shape == (batch, action_dim)
    assert bool(jnp.all(jnp.isfinite(probs)))
    assert jnp.allclose(probs, ref, atol=2e-3), "mismatch vs reference"
    assert jnp.allclose(jnp.sum(probs, axis=1), 1.0, atol=1e-4), "rows not normalized"

    print("KERNEL_OK")
</pallas_src>

<mosaic_0001>
module attributes {stable_mosaic.version = 11 : i64} {
  func.func @_policy_mlp_kernel(%arg0: i32, %arg1: memref<8x16xf32, #tpu.memory_space<vmem>>, %arg2: memref<16x32xbf16, #tpu.memory_space<vmem>>, %arg3: memref<1x32xf32, #tpu.memory_space<vmem>>, %arg4: memref<32x4xbf16, #tpu.memory_space<vmem>>, %arg5: memref<1x4xf32, #tpu.memory_space<vmem>>, %arg6: memref<8x4xf32, #tpu.memory_space<vmem>>) attributes {dimension_semantics = [#tpu.dimension_semantics<parallel>], iteration_bounds = array<i64: 1>, scalar_prefetch = 0 : i64, scratch_operands = 0 : i64, tpu.core_type = #tpu.core_type<tc>, window_params = [{transform_indices = @transform_0, window_bounds = array<i64: 8, 16>}, {pipeline_mode = #tpu.pipeline_mode<synchronous>, transform_indices = @transform_1, window_bounds = array<i64: 16, 32>}, {pipeline_mode = #tpu.pipeline_mode<synchronous>, transform_indices = @transform_2, window_bounds = array<i64: 1, 32>}, {pipeline_mode = #tpu.pipeline_mode<synchronous>, transform_indices = @transform_3, window_bounds = array<i64: 32, 4>}, {pipeline_mode = #tpu.pipeline_mode<synchronous>, transform_indices = @transform_4, window_bounds = array<i64: 1, 4>}, {transform_indices = @transform_5, window_bounds = array<i64: 8, 4>}]} {
    %c0 = arith.constant 0 : index
    %c0_0 = arith.constant 0 : index
    %0 = vector.load %arg1[%c0, %c0_0] : memref<8x16xf32, #tpu.memory_space<vmem>>, vector<8x16xf32>
    %1 = arith.truncf %0 : vector<8x16xf32> to vector<8x16xbf16>
    %c0_1 = arith.constant 0 : index
    %c0_2 = arith.constant 0 : index
    %2 = vector.load %arg2[%c0_1, %c0_2] : memref<16x32xbf16, #tpu.memory_space<vmem>>, vector<16x32xbf16>
    %cst = arith.constant dense<0.000000e+00> : vector<8x32xf32>
    %3 = tpu.matmul %1, %2, %cst {dimension_numbers = #tpu.dot_dimension_numbers<[1], [0], [0], [1], [0, 0, 1, 1], [], []>} : vector<8x16xbf16>, vector<16x32xbf16>, vector<8x32xf32> -> vector<8x32xf32>
    %c0_3 = arith.constant 0 : index
    %c0_4 = arith.constant 0 : index
    %4 = vector.load %arg3[%c0_3, %c0_4] : memref<1x32xf32, #tpu.memory_space<vmem>>, vector<1x32xf32>
    %5 = vector.broadcast %4 : vector<1x32xf32> to vector<8x32xf32>
    %6 = arith.addf %3, %5 : vector<8x32xf32>
    %cst_5 = arith.constant 0.000000e+00 : f32
    %7 = vector.broadcast %cst_5 : f32 to vector<8x32xf32>
    %8 = arith.maximumf %6, %7 : vector<8x32xf32>
    %9 = arith.truncf %8 : vector<8x32xf32> to vector<8x32xbf16>
    %c0_6 = arith.constant 0 : index
    %c0_7 = arith.constant 0 : index
    %10 = vector.load %arg4[%c0_6, %c0_7] : memref<32x4xbf16, #tpu.memory_space<vmem>>, vector<32x4xbf16>
    %cst_8 = arith.constant dense<0.000000e+00> : vector<8x4xf32>
    %11 = tpu.matmul %9, %10, %cst_8 {dimension_numbers = #tpu.dot_dimension_numbers<[1], [0], [0], [1], [0, 0, 1, 1], [], []>} : vector<8x32xbf16>, vector<32x4xbf16>, vector<8x4xf32> -> vector<8x4xf32>
    %c0_9 = arith.constant 0 : index
    %c0_10 = arith.constant 0 : index
    %12 = vector.load %arg5[%c0_9, %c0_10] : memref<1x4xf32, #tpu.memory_space<vmem>>, vector<1x4xf32>
    %13 = vector.broadcast %12 : vector<1x4xf32> to vector<8x4xf32>
    %14 = arith.addf %11, %13 : vector<8x4xf32>
    %cst_11 = arith.constant dense<0xFF800000> : vector<8xf32>
    %15 = vector.multi_reduction <maximumf>, %14, %cst_11 [1] : vector<8x4xf32> to vector<8xf32>
    %16 = vector.shape_cast %15 : vector<8xf32> to vector<8x1xf32>
    %17 = vector.broadcast %16 : vector<8x1xf32> to vector<8x4xf32>
    %18 = arith.subf %14, %17 : vector<8x4xf32>
    %19 = math.exp %18 : vector<8x4xf32>
    %cst_12 = arith.constant dense<0.000000e+00> : vector<8xf32>
    %20 = vector.multi_reduction <add>, %19, %cst_12 [1] : vector<8x4xf32> to vector<8xf32>
    %21 = vector.shape_cast %20 : vector<8xf32> to vector<8x1xf32>
    %22 = vector.broadcast %21 : vector<8x1xf32> to vector<8x4xf32>
    %23 = arith.divf %19, %22 : vector<8x4xf32>
    %c0_13 = arith.constant 0 : index
    %c0_14 = arith.constant 0 : index
    %24 = vector.load %arg6[%c0_13, %c0_14] : memref<8x4xf32, #tpu.memory_space<vmem>>, vector<8x4xf32>
    tpu.vector_store %arg6[%c0_13, %c0_14], %23 {strides = array<i32>} : memref<8x4xf32, #tpu.memory_space<vmem>>, vector<8x4xf32>,
    return
  }
  func.func @transform_0(%arg0: i32) -> (i32, i32) {
    %c0_i32 = arith.constant 0 : i32
    %c0_i32_0 = arith.constant 0 : i32
    return %arg0, %c0_i32 : i32, i32
  }
  func.func @transform_1(%arg0: i32) -> (i32, i32) {
    %c0_i32 = arith.constant 0 : i32
    %c0_i32_0 = arith.constant 0 : i32
    %c0_i32_1 = arith.constant 0 : i32
    return %c0_i32, %c0_i32_0 : i32, i32
  }
  func.func @transform_2(%arg0: i32) -> (i32, i32) {
    %c0_i32 = arith.constant 0 : i32
    %c0_i32_0 = arith.constant 0 : i32
    %c0_i32_1 = arith.constant 0 : i32
    return %c0_i32, %c0_i32_0 : i32, i32
  }
  func.func @transform_3(%arg0: i32) -> (i32, i32) {
    %c0_i32 = arith.constant 0 : i32
    %c0_i32_0 = arith.constant 0 : i32
    %c0_i32_1 = arith.constant 0 : i32
    return %c0_i32, %c0_i32_0 : i32, i32
  }
  func.func @transform_4(%arg0: i32) -> (i32, i32) {
    %c0_i32 = arith.constant 0 : i32
    %c0_i32_0 = arith.constant 0 : i32
    %c0_i32_1 = arith.constant 0 : i32
    return %c0_i32, %c0_i32_0 : i32, i32
  }
  func.func @transform_5(%arg0: i32) -> (i32, i32) {
    %c0_i32 = arith.constant 0 : i32
    %c0_i32_0 = arith.constant 0 : i32
    return %arg0, %c0_i32 : i32, i32
  }
}

</mosaic_0001>

<llo_original>
// kernel: policy_mlp_forward.1
$region0: #{policy_mlp_forward.1}
  #allocation0 [shape = 'u32[]', space=smem, size = 0x4, offset = 0x4, fixed_abs, tag = 'smem constant byte address 0x4 - core index']
  #allocation1 [shape = 'u32[72,128]{1,0:T(1,128)}', space=vmem, size = 0x9000, scoped, tag = 'internal scratch']
  %s0 = inlined_call_operand.vmem [shape: f32[8,16], index: 0, kind: input, shape index: {}]
  %s1 = inlined_call_operand.vmem [shape: bf16[16,32], index: 1, kind: input, shape index: {}]
  %s2 = inlined_call_operand.vmem [shape: f32[1,32], index: 2, kind: input, shape index: {}]
  %s3 = inlined_call_operand.vmem [shape: bf16[32,4], index: 3, kind: input, shape index: {}]
  %s4 = inlined_call_operand.vmem [shape: f32[1,4], index: 4, kind: input, shape index: {}]
  %s5 = inlined_call_operand.vmem [shape: f32[8,4], index: 5, kind: output, shape index: {}]
  %s6 = sld [smem:[#allocation0]]
  $region30: #{policy_mlp_forward.1} parent=0
    _
  %s8 = ssub.s32 1, %s6
  %s9 = scalar_select 0, %s8, %s6
  // Predicated region
  $region2: #{policy_mlp_forward.1} parent=0 // pred_check
    _
  $region3: #{policy_mlp_forward.1} parent=0 // pred_check_branch
    %11 = sbr.rel (0) target = $region5
  $region4: #{policy_mlp_forward.1} parent=0 // pred_region
    _
  $region5: #{policy_mlp_forward.1} parent=0 // pred_fallthru
    _
  // Predicated region
  $region6: #{policy_mlp_forward.1} parent=0 // pred_check
    _
  $region7: #{policy_mlp_forward.1} parent=0 // pred_check_branch
    %13 = sbr.rel (0) target = $region9
  $region8: #{policy_mlp_forward.1} parent=0 // pred_region
    _
  $region9: #{policy_mlp_forward.1} parent=0 // pred_fallthru
    _
  // Predicated region
  $region10: #{policy_mlp_forward.1} parent=0 // pred_check
    _
  $region11: #{policy_mlp_forward.1} parent=0 // pred_check_branch
    %15 = sbr.rel (0) target = $region13
  $region12: #{policy_mlp_forward.1} parent=0 // pred_region
    _
  $region13: #{policy_mlp_forward.1} parent=0 // pred_fallthru
    _
  // Predicated region
  $region14: #{policy_mlp_forward.1} parent=0 // pred_check
    _
  $region15: #{policy_mlp_forward.1} parent=0 // pred_check_branch
    %17 = sbr.rel (0) target = $region17
  $region16: #{policy_mlp_forward.1} parent=0 // pred_region
    _
  $region17: #{policy_mlp_forward.1} parent=0 // pred_fallthru
    _
  // Predicated region
  $region18: #{policy_mlp_forward.1} parent=0 // pred_check
    _
  $region19: #{policy_mlp_forward.1} parent=0 // pred_check_branch
    %19 = sbr.rel (0) target = $region21
  $region20: #{policy_mlp_forward.1} parent=0 // pred_region
    _
  $region21: #{policy_mlp_forward.1} parent=0 // pred_fallthru
    _
  %v21 = vld [vmem:[%s0] sm:$0xff]
  %v22 = vpack.c.bf16 %v21, %v21
  %v23 = vld [vmem:[%s1] sm:$0xf]
  %v24 = vld [vmem:[%s1 + $0x4] sm:$0xf]
  %v25 = vld [vmem:[%s2] sm:$0x1]
  %v27 = vperm.slane %v25, 0
  %v31 = vunpack.c.l.b16 %v23
  %v32 = vunpack.c.l.b16 %v24
  %v33 = vpack.c.b16 %v32, %v31
  %vm35 = vcmask 130048
  %v37 = vsel %vm35, %v22, 0
  %39 = vmatpush.bf16.msra.mxu0 0
  %40 = vmatpush.bf16.msra.mxu0 0
  %41 = vmatpush.bf16.msra.mxu0 0
  %42 = vmatpush.bf16.msra.mxu0 0
  %43 = vmatpush.bf16.msra.mxu0 0
  %44 = vmatpush.bf16.msra.mxu0 0
  %45 = vmatpush.bf16.msra.mxu0 0
  %46 = vmatpush.bf16.msra.mxu0 %v33
  %47 = vmatmul.bf16.gmra.mxu0 %v37
  %v48 = vpop.f32.mrf.mxu0
  %v49 = vadd.f32 %v27, %v48
  %v50 = vpop.f32.mrf.mxu0
  %51 = vdwg.mxu0
  %v52 = vmax.f32 %v49, 0.0
  %v53 = vpack.c.bf16 %v52, %v52
  %v54 = vld [vmem:[%s3] sm:$0xf]
  %v55 = vld [vmem:[%s3 + $0x4] sm:$0xf]
  %v56 = vld [vmem:[%s3 + $0x8] sm:$0xf]
  %v57 = vld [vmem:[%s3 + $0xc] sm:$0xf]
  %v58 = vld [vmem:[%s4] sm:$0x1]
  %v60 = vperm.slane %v58, 0
  %v66 = vunpack.c.l.b16 %v54
  %v67 = vunpack.c.l.b16 %v55
  %v68 = vunpack.c.l.b16 %v56
  %v69 = vunpack.c.l.b16 %v57
  %v70 = vpack.c.b16 %v67, %v66
  %v71 = vpack.c.b16 %v69, %v68
  %vm74 = vcmask 261120
  %v76 = vsel %vm74, %v53, 0
  %78 = vmatpush.bf16.msra.mxu0 0
  %79 = vmatpush.bf16.msra.mxu0 0
  %80 = vmatpush.bf16.msra.mxu0 0
  %81 = vmatpush.bf16.msra.mxu0 0
  %82 = vmatpush.bf16.msra.mxu0 0
  %83 = vmatpush.bf16.msra.mxu0 0
  %84 = vmatpush.bf16.msra.mxu0 %v71
  %85 = vmatpush.bf16.msra.mxu0 %v70
  %86 = vmatmul.bf16.gmra.mxu0 %v76
  %v87 = vpop.f32.mrf.mxu0
  %v88 = vadd.f32 %v60, %v87
  %v89 = vpop.f32.mrf.mxu0
  %90 = vdwg.mxu0
  %vm91 = vcmask 31744
  %v92 = vsel %vm91, %v88, -inf
  %93 = vmax.xlane.f32.xlu0 %v92
  %v94 = vpop.xlane.xlu0 %93
  %v95 = vsub.f32 %v88, %v94
  %v96 = vmul.f32 %v95, 1.442695
  %v97 = vpow.pop %v96
  %v98 = vsel %vm91, %v97, 0.0
  %99 = vadd.xlane.f32.xlu0 %v98
  %v100 = vpop.xlane.xlu0 %99
  %v101 = vrcp.pop %v100
  %v102 = vmul.f32 %v100, %v101
  %v103 = vsub.f32 1.0, %v102
  %v104 = vmul.f32 %v101, %v103
  %v105 = vadd.f32 %v101, %v104
  %vm106 = vweird.f32 %v100
  %vm107 = vweird.f32 %v101
  %vm108 = vmor %vm106, %vm107
  %v109 = vsel %vm108, %v101, %v105
  %v110 = vand.u32 2147483647, %v100
  %vm111 = vcmp.eq.f32.partialorder %v110, 8.507059e+37
  %v112 = vand.u32 %v100, 2147483648
  %v113 = vor.u32 1.1754944e-38, %v112
  %v114 = vsel %vm111, %v113, %v109
  %v115 = vmul.f32 %v97, %v114
  %116 = vst.msk [vmem:[%s5] sm:$0xff] %vm91, %v115
  // Predicated region
  $region22: #{policy_mlp_forward.1} parent=0 // pred_check
    _
  $region23: #{policy_mlp_forward.1} parent=0 // pred_check_branch
    %118 = sbr.rel (0) target = $region25
  $region24: #{policy_mlp_forward.1} parent=0 // pred_region
    _
  $region25: #{policy_mlp_forward.1} parent=0 // pred_fallthru
    _
  // Predicated region
  $region26: #{policy_mlp_forward.1} parent=0 // pred_check
    _
  $region27: #{policy_mlp_forward.1} parent=0 // pred_check_branch
    %120 = sbr.rel (0) target = $region29
  $region28: #{policy_mlp_forward.1} parent=0 // pred_region
    _
  $region29: #{policy_mlp_forward.1} parent=0 // pred_fallthru
    _

</llo_original>
